<compile_context>
chip_gen: v6e
topology: v6e:2x2x1
jax: 0.10.0
libtpu: 0.0.40
codegen_flags: <defaults>
</compile_context>

<pallas_src>
import functools

import jax
import jax.numpy as jnp
from jax.experimental import pallas as pl
from jax.experimental.pallas import tpu as pltpu


# ----------------------------------------------------------------------------
# Kernel
# ----------------------------------------------------------------------------
def _make_decoder_kernel(n_rest: int, non_linear: bool, compute_dtype):
    """n_rest = number of matmuls AFTER the (fused-concat) first layer.

    Total matmuls = n_rest + 1; the last matmul is the mean head (no ReLU).
    Every feature width is padded to the same lane-dense D = d_pad; zero
    padding keeps padded lanes exactly zero through every layer.
    """
    n_mats = n_rest + 1

    def _layers(x0, w0, wrest_ref, b):
        # fused first layer: x = [z|c|0]@W0 + b0  (single K<=128 MXU pass)
        x = jnp.dot(x0, w0, preferred_element_type=jnp.float32) + b[0:1]
        if non_linear and n_mats > 1:       # first layer is a hidden layer
            x = jnp.maximum(x, 0.0)
        # Static unroll is fine for this tiny depth.  If the decoder ever gets
        # > ~4 hidden layers, switch to lax.fori_loop(..., unroll=True) over
        # wrest_ref[l] to bound vreg live ranges.
        for l in range(n_rest):
            x = jnp.dot(x.astype(compute_dtype), wrest_ref[l],
                        preferred_element_type=jnp.float32) + b[l + 1:l + 2]
            if non_linear and l < n_rest - 1:   # no ReLU after the mean head
                x = jnp.maximum(x, 0.0)
        return x

    if n_rest > 0:
        def kernel(x0_ref, w0_ref, wrest_ref, b_ref, mu_ref):
            x = _layers(x0_ref[...], w0_ref[...], wrest_ref, b_ref[...])
            # lane-dense store of the full padded width; slice happens in XLA
            mu_ref[...] = x.astype(mu_ref.dtype)
    else:
        def kernel(x0_ref, w0_ref, b_ref, mu_ref):
            x = _layers(x0_ref[...], w0_ref[...], None, b_ref[...])
            mu_ref[...] = x.astype(mu_ref.dtype)

    return kernel


# ----------------------------------------------------------------------------
# Wrapper
# ----------------------------------------------------------------------------
@functools.partial(jax.jit, static_argnames=("c_dim", "non_linear", "tile_n"))
def decoder_forward(z, c, w0, wrest, bpack, scale, *, c_dim, non_linear,
                    tile_n=1024):
    """Returns (mu, scale); scale is the cached exp(0.5*logvar), (1, input_dim)."""
    d_in_pad, d_pad = w0.shape
    input_dim = scale.shape[-1]
    n_rest = 0 if wrest is None else wrest.shape[0]
    n_mats = n_rest + 1
    compute_dtype = w0.dtype

    # Fused first-layer input slab: [ z | c | 0 ... ] padded to d_in_pad lanes.
    c2 = c.reshape(-1, c_dim)
    x0 = jnp.concatenate([z, c2], axis=1)
    x0 = jnp.pad(x0, ((0, 0), (0, d_in_pad - x0.shape[1]))).astype(compute_dtype)

    n = x0.shape[0]
    tile_n = min(tile_n, n)
    # v7x megacore: keep >= 2 grid steps so the "parallel" batch axis can shard
    # across both TensorCores (no-op on v5e/v6e, one extra ~0.35us grid step).
    if n >= 16 and -(-n // tile_n) < 2:
        tile_n = ((((n + 1) // 2) + 7) // 8) * 8
    grid = (pl.cdiv(n, tile_n),)

    kernel = _make_decoder_kernel(n_rest, non_linear, compute_dtype)

    in_specs = [
        pl.BlockSpec((tile_n, d_in_pad), lambda i: (i, 0)),   # input slab: tiled rows
        pl.BlockSpec((d_in_pad, d_pad), lambda i: (0, 0)),    # W0: VMEM-resident
    ]
    args = [x0, w0]
    if n_rest > 0:
        in_specs.append(pl.BlockSpec((n_rest, d_pad, d_pad), lambda i: (0, 0, 0)))
        args.append(wrest)
    in_specs.append(pl.BlockSpec((n_mats, d_pad), lambda i: (0, 0)))
    args.append(bpack)

    mu_full = pl.pallas_call(
        kernel,
        out_shape=jax.ShapeDtypeStruct((n, d_pad), jnp.float32),
        grid=grid,
        in_specs=in_specs,
        out_specs=pl.BlockSpec((tile_n, d_pad), lambda i: (i, 0)),
        compiler_params=pltpu.CompilerParams(dimension_semantics=("parallel",)),
    )(*args)

    # Padded lanes are exact zeros + bias padding; drop them with an XLA slice.
    return mu_full[:, :input_dim], scale


# ----------------------------------------------------------------------------
# One-time parameter packing (outside the hot path)
# ----------------------------------------------------------------------------
def pack_decoder_params(raw, *, c_dim, dtype=jnp.bfloat16, lane=128):
    """Pack torch-style params into lane-dense padded arrays for the kernel."""
    mats = list(raw["hidden"]) + [(raw["w_mean"], raw["b_mean"])]
    w0 = mats[0][0]
    d_in = w0.shape[0]                                     # latent_dim + c_dim

    def rup(x):
        return ((x + lane - 1) // lane) * lane

    d_pad = rup(max(w.shape[1] for w, _ in mats))          # lane-dense feature width
    d_in_pad = rup(d_in)

    w0p = jnp.pad(w0, ((0, d_in_pad - w0.shape[0]),
                       (0, d_pad - w0.shape[1]))).astype(dtype)
    if len(mats) > 1:
        wrest = jnp.stack([
            jnp.pad(w, ((0, d_pad - w.shape[0]), (0, d_pad - w.shape[1])))
            for w, _ in mats[1:]
        ]).astype(dtype)
    else:
        wrest = None
    # biases stay f32: tiny, added after the f32 accumulation
    bpack = jnp.stack([
        jnp.pad(jnp.reshape(b, (-1,)), (0, d_pad - b.shape[-1]))
        for _, b in mats
    ]).astype(jnp.float32)
    # input-independent: Normal scale = exp(logvar)**0.5 == exp(0.5*logvar)
    scale = jnp.exp(0.5 * raw["logvar"]).astype(jnp.float32)
    return {"w0": w0p, "wrest": wrest, "bpack": bpack, "scale": scale}


# ----------------------------------------------------------------------------
# Deterministic parameter construction (mirrors Decoder.__init__ shapes)
# ----------------------------------------------------------------------------
def init_decoder_params(key, input_dim, hidden_dim, c_dim, init_logvar=-3.0):
    hidden_dims = hidden_dim[::-1]
    layer_sizes = list(hidden_dims) + [input_dim]
    layer_sizes[0] = hidden_dims[0] + c_dim

    params = {"hidden": []}
    keys = jax.random.split(key, 2 * len(layer_sizes))
    ki = 0
    for d0, d1 in zip(layer_sizes[:-2], layer_sizes[1:-1]):   # decoder_layers
        w = jax.random.normal(keys[ki], (d0, d1), jnp.float32) * 0.1
        b = jax.random.normal(keys[ki + 1], (1, d1), jnp.float32) * 0.1
        ki += 2
        params["hidden"].append((w, b))
    d0, d1 = layer_sizes[-2], layer_sizes[-1]                  # mean layer
    params["w_mean"] = jax.random.normal(keys[ki], (d0, d1), jnp.float32) * 0.1
    params["b_mean"] = jax.random.normal(keys[ki + 1], (1, d1), jnp.float32) * 0.1
    params["logvar"] = jnp.full((1, input_dim), init_logvar, jnp.float32)
    return params


# ----------------------------------------------------------------------------
# Pure-JAX reference (unpacked f32 params) for correctness check
# ----------------------------------------------------------------------------
def decoder_forward_ref(z, c, params, *, c_dim, non_linear):
    c = c.reshape(-1, c_dim)
    x = jnp.concatenate([z, c], axis=1)
    for w, b in params["hidden"]:
        x = x @ w + b
        if non_linear:
            x = jnp.maximum(x, 0.0)
    mu = x @ params["w_mean"] + params["b_mean"]
    scale = jnp.exp(0.5 * params["logvar"])
    return mu, scale


if __name__ == "__main__":
    # Config consistent with the module's forward:
    #   hidden_dim (encoder order) = [64, 32] -> decoder hidden_dims = [32, 64]
    #   latent dim = 32, c_dim = 4, input_dim = 16, batch = 256
    input_dim = 16
    hidden_dim = [64, 32]
    c_dim = 4
    non_linear = True
    batch = 256
    latent_dim = hidden_dim[::-1][0]  # 32

    key = jax.random.PRNGKey(0)
    kz, kc, kp = jax.random.split(key, 3)
    z = jax.random.normal(kz, (batch, latent_dim), jnp.float32)
    c = jax.random.normal(kc, (batch, c_dim), jnp.float32)
    raw = init_decoder_params(kp, input_dim, hidden_dim, c_dim, init_logvar=-3.0)
    # bf16 params + f32 accumulation (review suggestion for v6e/v7x)
    packed = pack_decoder_params(raw, c_dim=c_dim, dtype=jnp.bfloat16)

    mu, scale = decoder_forward(
        z, c, packed["w0"], packed["wrest"], packed["bpack"], packed["scale"],
        c_dim=c_dim, non_linear=non_linear, tile_n=1024)
    jax.block_until_ready((mu, scale))

    mu_ref, scale_ref = decoder_forward_ref(z, c, raw, c_dim=c_dim,
                                            non_linear=non_linear)
    assert mu.shape == (batch, input_dim) and scale.shape == (1, input_dim)
    # bf16 weights/activations with f32 accumulation -> relaxed tolerance
    assert jnp.allclose(mu, mu_ref, atol=5e-2, rtol=5e-2)
    assert jnp.allclose(scale, scale_ref, atol=1e-6, rtol=1e-6)

    print("KERNEL_OK")
</pallas_src>

<mosaic_0001>
module attributes {stable_mosaic.version = 11 : i64} {
  func.func @kernel(%arg0: i32, %arg1: memref<128x128xbf16, #tpu.memory_space<vmem>>, %arg2: memref<128x128xbf16, #tpu.memory_space<vmem>>, %arg3: memref<1x128x128xbf16, #tpu.memory_space<vmem>>, %arg4: memref<2x128xf32, #tpu.memory_space<vmem>>, %arg5: memref<128x128xf32, #tpu.memory_space<vmem>>) attributes {dimension_semantics = [#tpu.dimension_semantics<parallel>], iteration_bounds = array<i64: 2>, scalar_prefetch = 0 : i64, scratch_operands = 0 : i64, tpu.core_type = #tpu.core_type<tc>, window_params = [{transform_indices = @transform_0, window_bounds = array<i64: 128, 128>}, {pipeline_mode = #tpu.pipeline_mode<synchronous>, transform_indices = @transform_1, window_bounds = array<i64: 128, 128>}, {pipeline_mode = #tpu.pipeline_mode<synchronous>, transform_indices = @transform_2, window_bounds = array<i64: 1, 128, 128>}, {pipeline_mode = #tpu.pipeline_mode<synchronous>, transform_indices = @transform_3, window_bounds = array<i64: 2, 128>}, {transform_indices = @transform_4, window_bounds = array<i64: 128, 128>}]} {
    %c0 = arith.constant 0 : index
    %c0_0 = arith.constant 0 : index
    %0 = vector.load %arg1[%c0, %c0_0] : memref<128x128xbf16, #tpu.memory_space<vmem>>, vector<128x128xbf16>
    %c0_1 = arith.constant 0 : index
    %c0_2 = arith.constant 0 : index
    %1 = vector.load %arg2[%c0_1, %c0_2] : memref<128x128xbf16, #tpu.memory_space<vmem>>, vector<128x128xbf16>
    %c0_3 = arith.constant 0 : index
    %c0_4 = arith.constant 0 : index
    %2 = vector.load %arg4[%c0_3, %c0_4] : memref<2x128xf32, #tpu.memory_space<vmem>>, vector<2x128xf32>
    %cst = arith.constant dense<0.000000e+00> : vector<128x128xf32>
    %3 = tpu.matmul %0, %1, %cst {dimension_numbers = #tpu.dot_dimension_numbers<[1], [0], [0], [1], [0, 0, 1, 1], [], []>} : vector<128x128xbf16>, vector<128x128xbf16>, vector<128x128xf32> -> vector<128x128xf32>
    %4 = vector.extract_strided_slice %2 {offsets = [0, 0], sizes = [1, 128], strides = [1, 1]} : vector<2x128xf32> to vector<1x128xf32>
    %5 = vector.broadcast %4 : vector<1x128xf32> to vector<128x128xf32>
    %6 = arith.addf %3, %5 : vector<128x128xf32>
    %cst_5 = arith.constant 0.000000e+00 : f32
    %7 = vector.broadcast %cst_5 : f32 to vector<128x128xf32>
    %8 = arith.maximumf %6, %7 : vector<128x128xf32>
    %9 = arith.truncf %8 : vector<128x128xf32> to vector<128x128xbf16>
    %c0_6 = arith.constant 0 : index
    %c0_7 = arith.constant 0 : index
    %c0_8 = arith.constant 0 : index
    %10 = vector.load %arg3[%c0_6, %c0_7, %c0_8] : memref<1x128x128xbf16, #tpu.memory_space<vmem>>, vector<1x128x128xbf16>
    %11 = vector.shape_cast %10 : vector<1x128x128xbf16> to vector<128x128xbf16>
    %cst_9 = arith.constant dense<0.000000e+00> : vector<128x128xf32>
    %12 = tpu.matmul %9, %11, %cst_9 {dimension_numbers = #tpu.dot_dimension_numbers<[1], [0], [0], [1], [0, 0, 1, 1], [], []>} : vector<128x128xbf16>, vector<128x128xbf16>, vector<128x128xf32> -> vector<128x128xf32>
    %13 = vector.extract_strided_slice %2 {offsets = [1, 0], sizes = [1, 128], strides = [1, 1]} : vector<2x128xf32> to vector<1x128xf32>
    %14 = vector.broadcast %13 : vector<1x128xf32> to vector<128x128xf32>
    %15 = arith.addf %12, %14 : vector<128x128xf32>
    %c0_10 = arith.constant 0 : index
    %c0_11 = arith.constant 0 : index
    %16 = vector.load %arg5[%c0_10, %c0_11] : memref<128x128xf32, #tpu.memory_space<vmem>>, vector<128x128xf32>
    tpu.vector_store %arg5[%c0_10, %c0_11], %15 {strides = array<i32>} : memref<128x128xf32, #tpu.memory_space<vmem>>, vector<128x128xf32>,
    return
  }
  func.func @transform_0(%arg0: i32) -> (i32, i32) {
    %c0_i32 = arith.constant 0 : i32
    %c0_i32_0 = arith.constant 0 : i32
    return %arg0, %c0_i32 : i32, i32
  }
  func.func @transform_1(%arg0: i32) -> (i32, i32) {
    %c0_i32 = arith.constant 0 : i32
    %c0_i32_0 = arith.constant 0 : i32
    %c0_i32_1 = arith.constant 0 : i32
    return %c0_i32, %c0_i32_0 : i32, i32
  }
  func.func @transform_2(%arg0: i32) -> (i32, i32, i32) {
    %c0_i32 = arith.constant 0 : i32
    %c0_i32_0 = arith.constant 0 : i32
    %c0_i32_1 = arith.constant 0 : i32
    %c0_i32_2 = arith.constant 0 : i32
    return %c0_i32, %c0_i32_0, %c0_i32_1 : i32, i32, i32
  }
  func.func @transform_3(%arg0: i32) -> (i32, i32) {
    %c0_i32 = arith.constant 0 : i32
    %c0_i32_0 = arith.constant 0 : i32
    %c0_i32_1 = arith.constant 0 : i32
    return %c0_i32, %c0_i32_0 : i32, i32
  }
  func.func @transform_4(%arg0: i32) -> (i32, i32) {
    %c0_i32 = arith.constant 0 : i32
    %c0_i32_0 = arith.constant 0 : i32
    return %arg0, %c0_i32 : i32, i32
  }
}

</mosaic_0001>

<llo_original>
// kernel: decoder_forward.1
$region0: #{decoder_forward.1}
  #allocation0 [shape = 'u32[]', space=smem, size = 0x4, offset = 0x4, fixed_abs, tag = 'smem constant byte address 0x4 - core index']
  #allocation1 [shape = 'u32[144,128]{1,0:T(1,128)}', space=vmem, size = 0x12000, scoped, tag = 'internal scratch']
  %s0 = inlined_call_operand.vmem [shape: bf16[256,128], index: 0, kind: input, shape index: {}]
  %s1 = inlined_call_operand.vmem [shape: bf16[128,128], index: 1, kind: input, shape index: {}]
  %s2 = inlined_call_operand.vmem [shape: bf16[1,128,128], index: 2, kind: input, shape index: {}]
  %s3 = inlined_call_operand.vmem [shape: f32[2,128], index: 3, kind: input, shape index: {}]
  %s4 = inlined_call_operand.vmem [shape: f32[256,128], index: 4, kind: output, shape index: {}]
  %s5 = sld [smem:[#allocation0]]
  $region49: #{decoder_forward.1} parent=0
    _
  %s7 = ssub.s32 1, %s5
  %s8 = scalar_select 0, %s7, %s5
  loop: start=0, step=1, limit=4
  $region2: #{decoder_forward.1} parent=0 // loop_pre_header
    _
  $region3: #{decoder_forward.1} parent=0 // loop_header
    %s10 = sphi 0, %s14
    %p11 = scmp.ge.s32.totalorder %s10, 4
    %s20 = sphi 0, %s22
    %s23 = sphi 0, %s20
    %s24 = sphi 0, %s23
    %s40 = sphi 0, %s24
    %s44 = sphi 0, %s44
    %s46 = sphi 0, %s44
    %s47 = sphi 0, %s46
    %s61 = sphi 0, %s47
    %s65 = sphi 0, %s65
    %s67 = sphi 0, %s65
    %s68 = sphi 0, %s67
    %s82 = sphi 0, %s68
    %s86 = sphi 0, %s86
    %s88 = sphi 0, %s86
    %s89 = sphi 0, %s88
    %s103 = sphi 0, %s89
    %s109 = sphi 0, %s111
    %s112 = sphi 0, %s109
    %s113 = sphi 0, %s112
    %s129 = sphi 0, %s113
  $region4: #{decoder_forward.1} parent=0 // loop_header_branch
    %13 = sbr.rel (%p11) target = $region8
  $region5: #{decoder_forward.1} parent=0 // loop_body
    %s15 = ssub.s32 %s10, 1
    %s16 = ssub.s32 %s10, 2
    %s17 = sadd.s32 %s10, 1
    %s18 = ssub.s32 %s10, %s17
    %p19 = scmp.eq.s32.totalorder %s18, 0
    %s21 = sadd.s32 %s20, 1
    %s22 = scalar_select %p19, %s20, %s21
    %p25 = pneg %p19
    %p26 = scmp.eq.s32.totalorder %s10, 1
    %p27 = por %p25, %p26
    %p28 = scmp.ne.s32.totalorder %s20, %s23
    %p29 = scmp.eq.s32.totalorder %s10, 0
    %p30 = por %p28, %p29
    %p31 = scmp.ne.s32.totalorder %s20, %s23
    %p32 = scmp.eq.s32.totalorder %s15, 1
    %p33 = por %p31, %p32
    %p34 = scmp.ne.s32.totalorder %s23, %s24
    %p35 = scmp.eq.s32.totalorder %s15, 0
    %p36 = por %p34, %p35
    %p37 = scmp.ne.s32.totalorder %s23, %s24
    %p38 = scmp.eq.s32.totalorder %s16, 1
    %p39 = por %p37, %p38
    %p41 = scmp.ne.s32.totalorder %s24, %s40
    %p42 = scmp.eq.s32.totalorder %s16, 0
    %p43 = por %p41, %p42
    %s45 = sadd.s32 %s44, 1
    %p48 = scmp.eq.s32.totalorder %s10, 1
    %p49 = scmp.ne.s32.totalorder %s44, %s46
    %p50 = scmp.eq.s32.totalorder %s10, 0
    %p51 = por %p49, %p50
    %p52 = scmp.ne.s32.totalorder %s44, %s46
    %p53 = scmp.eq.s32.totalorder %s15, 1
    %p54 = por %p52, %p53
    %p55 = scmp.ne.s32.totalorder %s46, %s47
    %p56 = scmp.eq.s32.totalorder %s15, 0
    %p57 = por %p55, %p56
    %p58 = scmp.ne.s32.totalorder %s46, %s47
    %p59 = scmp.eq.s32.totalorder %s16, 1
    %p60 = por %p58, %p59
    %p62 = scmp.ne.s32.totalorder %s47, %s61
    %p63 = scmp.eq.s32.totalorder %s16, 0
    %p64 = por %p62, %p63
    %s66 = sadd.s32 %s65, 1
    %p69 = scmp.eq.s32.totalorder %s10, 1
    %p70 = scmp.ne.s32.totalorder %s65, %s67
    %p71 = scmp.eq.s32.totalorder %s10, 0
    %p72 = por %p70, %p71
    %p73 = scmp.ne.s32.totalorder %s65, %s67
    %p74 = scmp.eq.s32.totalorder %s15, 1
    %p75 = por %p73, %p74
    %p76 = scmp.ne.s32.totalorder %s67, %s68
    %p77 = scmp.eq.s32.totalorder %s15, 0
    %p78 = por %p76, %p77
    %p79 = scmp.ne.s32.totalorder %s67, %s68
    %p80 = scmp.eq.s32.totalorder %s16, 1
    %p81 = por %p79, %p80
    %p83 = scmp.ne.s32.totalorder %s68, %s82
    %p84 = scmp.eq.s32.totalorder %s16, 0
    %p85 = por %p83, %p84
    %s87 = sadd.s32 %s86, 1
    %p90 = scmp.eq.s32.totalorder %s10, 1
    %p91 = scmp.ne.s32.totalorder %s86, %s88
    %p92 = scmp.eq.s32.totalorder %s10, 0
    %p93 = por %p91, %p92
    %p94 = scmp.ne.s32.totalorder %s86, %s88
    %p95 = scmp.eq.s32.totalorder %s15, 1
    %p96 = por %p94, %p95
    %p97 = scmp.ne.s32.totalorder %s88, %s89
    %p98 = scmp.eq.s32.totalorder %s15, 0
    %p99 = por %p97, %p98
    %p100 = scmp.ne.s32.totalorder %s88, %s89
    %p101 = scmp.eq.s32.totalorder %s16, 1
    %p102 = por %p100, %p101
    %p104 = scmp.ne.s32.totalorder %s89, %s103
    %p105 = scmp.eq.s32.totalorder %s16, 0
    %p106 = por %p104, %p105
    %s107 = ssub.s32 %s10, %s17
    %p108 = scmp.eq.s32.totalorder %s107, 0
    %s110 = sadd.s32 %s109, 1
    %s111 = scalar_select %p108, %s109, %s110
    %p114 = pneg %p108
    %p115 = scmp.eq.s32.totalorder %s10, 1
    %p116 = por %p114, %p115
    %p117 = scmp.ne.s32.totalorder %s109, %s112
    %p118 = scmp.eq.s32.totalorder %s10, 0
    %p119 = por %p117, %p118
    %p120 = scmp.ne.s32.totalorder %s109, %s112
    %p121 = scmp.eq.s32.totalorder %s15, 1
    %p122 = por %p120, %p121
    %p123 = scmp.ne.s32.totalorder %s112, %s113
    %p124 = scmp.eq.s32.totalorder %s15, 0
    %p125 = por %p123, %p124
    %p126 = scmp.ne.s32.totalorder %s112, %s113
    %p127 = scmp.eq.s32.totalorder %s16, 1
    %p128 = por %p126, %p127
    %p130 = scmp.ne.s32.totalorder %s113, %s129
    %p131 = scmp.eq.s32.totalorder %s16, 0
    %p132 = por %p130, %p131
    %p133 = scmp.le.s32.totalorder 1, %s10
    %p134 = scmp.lt.s32.totalorder %s10, 3
    %p135 = pnand %p133, %p134
    %p136 = pneg %p135
    // Predicated region
    $region9: #{decoder_forward.1} parent=5 // pred_check
      _
    $region10: #{decoder_forward.1} parent=5 // pred_check_branch
      %138 = sbr.rel (%p135) target = $region12
    $region11: #{decoder_forward.1} parent=5 // pred_region
      %s139 = ssub.s32 %s10, 1
      // Predicated region
      $region13: #{decoder_forward.1} parent=11 // pred_check
        %p140 = pneg %p57
      $region14: #{decoder_forward.1} parent=11 // pred_check_branch
        %142 = sbr.rel (%p140) target = $region16
      $region15: #{decoder_forward.1} parent=11 // pred_region
        _
      $region16: #{decoder_forward.1} parent=11 // pred_fallthru
        _
      // Predicated region
      $region17: #{decoder_forward.1} parent=11 // pred_check
        %p143 = pneg %p78
      $region18: #{decoder_forward.1} parent=11 // pred_check_branch
        %145 = sbr.rel (%p143) target = $region20
      $region19: #{decoder_forward.1} parent=11 // pred_region
        _
      $region20: #{decoder_forward.1} parent=11 // pred_fallthru
        _
      // Predicated region
      $region21: #{decoder_forward.1} parent=11 // pred_check
        %p146 = pneg %p99
      $region22: #{decoder_forward.1} parent=11 // pred_check_branch
        %148 = sbr.rel (%p146) target = $region24
      $region23: #{decoder_forward.1} parent=11 // pred_region
        _
      $region24: #{decoder_forward.1} parent=11 // pred_fallthru
        _
    $region12: #{decoder_forward.1} parent=5 // pred_fallthru
      _
    %p149 = scmp.lt.s32.totalorder %s10, 2
    // Predicated region
    $region25: #{decoder_forward.1} parent=5 // pred_check
      %p150 = pneg %p149
    $region26: #{decoder_forward.1} parent=5 // pred_check_branch
      %152 = sbr.rel (%p150) target = $region28
    $region27: #{decoder_forward.1} parent=5 // pred_region
      // Predicated region
      $region29: #{decoder_forward.1} parent=27 // pred_check
        %p153 = pneg %p30
      $region30: #{decoder_forward.1} parent=27 // pred_check_branch
        %155 = sbr.rel (%p153) target = $region32
      $region31: #{decoder_forward.1} parent=27 // pred_region
        %s156 = smul.u32 16, %s10
        %p157 = scmp.lt.s32.totalorder %s156, 31
        %s158 = scalar_select %p157, %s156, 31
        %s159 = smul.addr %s158, 4
        %s160 = scalar_lea.vmem %s0, %s159
        %s161 = smul.u32 16, %s10
      $region32: #{decoder_forward.1} parent=27 // pred_fallthru
        _
    $region28: #{decoder_forward.1} parent=5 // pred_fallthru
      _
    %p162 = scmp.le.s32.totalorder 1, %s10
    %p163 = scmp.lt.s32.totalorder %s10, 3
    %p164 = pnand %p162, %p163
    %p165 = pneg %p164
    // Predicated region
    $region33: #{decoder_forward.1} parent=5 // pred_check
      _
    $region34: #{decoder_forward.1} parent=5 // pred_check_branch
      %167 = sbr.rel (%p164) target = $region36
    $region35: #{decoder_forward.1} parent=5 // pred_region
      %s168 = ssub.s32 %s10, 1
      %s169 = smul.u32 16, %s15
      %p170 = scmp.lt.s32.totalorder %s169, 31
      %s171 = scalar_select %p170, %s169, 31
      %s172 = smul.addr %s171, 4
      %s173 = scalar_lea.vmem %s0, %s172
      %p174 = pneg %p36
      %p175 = pneg %p33
      %p176 = pneg %p57
      %p177 = pneg %p54
      %p178 = pneg %p78
      %p179 = pneg %p75
      %p180 = pneg %p99
      %p181 = pneg %p96
      %p182 = pneg %p125
      %p183 = pneg %p122
      %s184 = smul.u32 16, %s15
      %p185 = scmp.lt.s32.totalorder %s184, 31
      %s186 = scalar_select %p185, %s184, 31
      %s187 = smul.addr %s186, 8
      %s188 = scalar_lea.vmem %s4, %s187
      %s189 = smul.u32 16, %s15
      %p190 = scmp.lt.s32.totalorder %s189, 31
      %s191 = scalar_select %p190, %s189, 31
      %s192 = smul.addr %s191, 4
      %s193 = scalar_lea.vmem %s0, %s192
      %s194 = smul.u32 16, %s15
      %s195 = smul.u32 16, %s15
      %p196 = scmp.lt.s32.totalorder %s195, 31
      %s197 = scalar_select %p196, %s195, 31
      %s198 = smul.addr %s197, 8
      %s199 = scalar_lea.vmem %s4, %s198
      %s200 = smul.u32 16, %s15
      %v202 = vld [vmem:[%s193] sm:$0xf]
      %v203 = vld [vmem:[%s193 + $0x4] sm:$0xf]
      %v204 = vld [vmem:[%s193 + $0x8] sm:$0xf]
      %v205 = vld [vmem:[%s193 + $0xc] sm:$0xf]
      %v206 = vld [vmem:[%s193 + $0x10] sm:$0xf]
      %v207 = vld [vmem:[%s193 + $0x14] sm:$0xf]
      %v208 = vld [vmem:[%s193 + $0x18] sm:$0xf]
      %v209 = vld [vmem:[%s193 + $0x1c] sm:$0xf]
      %v210 = vld [vmem:[%s193 + $0x20] sm:$0xf]
      %v211 = vld [vmem:[%s193 + $0x24] sm:$0xf]
      %v212 = vld [vmem:[%s193 + $0x28] sm:$0xf]
      %v213 = vld [vmem:[%s193 + $0x2c] sm:$0xf]
      %v214 = vld [vmem:[%s193 + $0x30] sm:$0xf]
      %v215 = vld [vmem:[%s193 + $0x34] sm:$0xf]
      %v216 = vld [vmem:[%s193 + $0x38] sm:$0xf]
      %v217 = vld [vmem:[%s193 + $0x3c] sm:$0xf]
      %v218 = vld [vmem:[%s1] sm:$0xf]
      %v219 = vld [vmem:[%s1 + $0x4] sm:$0xf]
      %v220 = vld [vmem:[%s1 + $0x8] sm:$0xf]
      %v221 = vld [vmem:[%s1 + $0xc] sm:$0xf]
      %v222 = vld [vmem:[%s1 + $0x10] sm:$0xf]
      %v223 = vld [vmem:[%s1 + $0x14] sm:$0xf]
      %v224 = vld [vmem:[%s1 + $0x18] sm:$0xf]
      %v225 = vld [vmem:[%s1 + $0x1c] sm:$0xf]
      %v226 = vld [vmem:[%s1 + $0x20] sm:$0xf]
      %v227 = vld [vmem:[%s1 + $0x24] sm:$0xf]
      %v228 = vld [vmem:[%s1 + $0x28] sm:$0xf]
      %v229 = vld [vmem:[%s1 + $0x2c] sm:$0xf]
      %v230 = vld [vmem:[%s1 + $0x30] sm:$0xf]
      %v231 = vld [vmem:[%s1 + $0x34] sm:$0xf]
      %v232 = vld [vmem:[%s1 + $0x38] sm:$0xf]
      %v233 = vld [vmem:[%s1 + $0x3c] sm:$0xf]
      %v234 = vld [vmem:[%s3] sm:$0x3]
      %v235 = vlaneseq
      %v236 = vshrl.u32 %v235, 7
      %v237 = vsub.s32 0, %v236
      %v238 = vrot.slane %v234, %v237
      %v255 = vunpack.c.l.b16 %v202
      %v256 = vunpack.c.l.b16 %v203
      %v257 = vunpack.c.l.b16 %v204
      %v258 = vunpack.c.l.b16 %v205
      %v259 = vunpack.c.l.b16 %v206
      %v260 = vunpack.c.l.b16 %v207
      %v261 = vunpack.c.l.b16 %v208
      %v262 = vunpack.c.l.b16 %v209
      %v263 = vunpack.c.l.b16 %v210
      %v264 = vunpack.c.l.b16 %v211
      %v265 = vunpack.c.l.b16 %v212
      %v266 = vunpack.c.l.b16 %v213
      %v267 = vunpack.c.l.b16 %v214
      %v268 = vunpack.c.l.b16 %v215
      %v269 = vunpack.c.l.b16 %v216
      %v270 = vunpack.c.l.b16 %v217
      %v271 = vpack.c.b16 %v256, %v255
      %v272 = vpack.c.b16 %v258, %v257
      %v273 = vpack.c.b16 %v260, %v259
      %v274 = vpack.c.b16 %v262, %v261
      %v275 = vpack.c.b16 %v264, %v263
      %v276 = vpack.c.b16 %v266, %v265
      %v277 = vpack.c.b16 %v268, %v267
      %v278 = vpack.c.b16 %v270, %v269
      %v303 = vunpack.c.l.b16 %v218
      %v304 = vunpack.c.l.b16 %v219
      %v305 = vunpack.c.l.b16 %v220
      %v306 = vunpack.c.l.b16 %v221
      %v307 = vunpack.c.l.b16 %v222
      %v308 = vunpack.c.l.b16 %v223
      %v309 = vunpack.c.l.b16 %v224
      %v310 = vunpack.c.l.b16 %v225
      %v311 = vunpack.c.l.b16 %v226
      %v312 = vunpack.c.l.b16 %v227
      %v313 = vunpack.c.l.b16 %v228
      %v314 = vunpack.c.l.b16 %v229
      %v315 = vunpack.c.l.b16 %v230
      %v316 = vunpack.c.l.b16 %v231
      %v317 = vunpack.c.l.b16 %v232
      %v318 = vunpack.c.l.b16 %v233
      %v319 = vpack.c.b16 %v304, %v303
      %v320 = vpack.c.b16 %v306, %v305
      %v321 = vpack.c.b16 %v308, %v307
      %v322 = vpack.c.b16 %v310, %v309
      %v323 = vpack.c.b16 %v312, %v311
      %v324 = vpack.c.b16 %v314, %v313
      %v325 = vpack.c.b16 %v316, %v315
      %v326 = vpack.c.b16 %v318, %v317
      %335 = vmatprep.subr.bf16.mxu0 0
      %336 = vmatpush1.bf16.msra.mxu0 %v326
      %337 = vmatprep.subr.bf16.mxu0 0
      %338 = vmatpush1.bf16.msra.mxu0 %v325
      %339 = vmatprep.subr.bf16.mxu0 0
      %340 = vmatpush1.bf16.msra.mxu0 %v324
      %341 = vmatprep.subr.bf16.mxu0 0
      %342 = vmatpush1.bf16.msra.mxu0 %v323
      %343 = vmatprep.subr.bf16.mxu0 0
      %344 = vmatpush1.bf16.msra.mxu0 %v322
      %345 = vmatprep.subr.bf16.mxu0 0
      %346 = vmatpush1.bf16.msra.mxu0 %v321
      %347 = vmatprep.subr.bf16.mxu0 0
      %348 = vmatpush1.bf16.msra.mxu0 %v320
      %349 = vmatprep.subr.bf16.mxu0 0
      %350 = vmatpush1.bf16.msra.mxu0 %v319
      %351 = vmatprep.subr.bf16.mxu0 0
      %352 = vmatpush2.bf16.msra.mxu0 0
      %353 = vmatprep.subr.bf16.mxu0 0
      %354 = vmatpush2.bf16.msra.mxu0 0
      %355 = vmatprep.subr.bf16.mxu0 0
      %356 = vmatpush2.bf16.msra.mxu0 0
      %357 = vmatprep.subr.bf16.mxu0 0
      %358 = vmatpush2.bf16.msra.mxu0 0
      %359 = vmatprep.subr.bf16.mxu0 0
      %360 = vmatpush2.bf16.msra.mxu0 0
      %361 = vmatprep.subr.bf16.mxu0 0
      %362 = vmatpush2.bf16.msra.mxu0 0
      %363 = vmatprep.subr.bf16.mxu0 0
      %364 = vmatpush2.bf16.msra.mxu0 0
      %365 = vmatprep.subr.bf16.mxu0 0
      %366 = vmatpush2.bf16.msra.mxu0 0
      %367 = vmatprep.mubr.bf16.mxu0 0
      %368 = vmatmul.mubr.bf16.gmra.mxu0 %v271
      %v369 = vpop.f32.mrf.mxu0
      %v370 = vadd.f32 %v238, %v369
      %v371 = vpop.f32.mrf.mxu0
      %v372 = vpop.f32.mrf.mxu0
      %v373 = vadd.f32 %v238, %v372
      %v374 = vpop.f32.mrf.mxu0
      %375 = vmatprep.mubr.bf16.mxu0 0
      %376 = vmatmul.mubr.bf16.gmra.mxu0 %v272
      %v377 = vpop.f32.mrf.mxu0
      %v378 = vadd.f32 %v238, %v377
      %v379 = vpop.f32.mrf.mxu0
      %v380 = vpop.f32.mrf.mxu0
      %v381 = vadd.f32 %v238, %v380
      %v382 = vpop.f32.mrf.mxu0
      %383 = vmatprep.mubr.bf16.mxu0 0
      %384 = vmatmul.mubr.bf16.gmra.mxu0 %v273
      %v385 = vpop.f32.mrf.mxu0
      %v386 = vadd.f32 %v238, %v385
      %v387 = vpop.f32.mrf.mxu0
      %v388 = vpop.f32.mrf.mxu0
      %v389 = vadd.f32 %v238, %v388
      %v390 = vpop.f32.mrf.mxu0
      %391 = vmatprep.mubr.bf16.mxu0 0
      %392 = vmatmul.mubr.bf16.gmra.mxu0 %v274
      %v393 = vpop.f32.mrf.mxu0
      %v394 = vadd.f32 %v238, %v393
      %v395 = vpop.f32.mrf.mxu0
      %v396 = vpop.f32.mrf.mxu0
      %v397 = vadd.f32 %v238, %v396
      %v398 = vpop.f32.mrf.mxu0
      %399 = vmatprep.mubr.bf16.mxu0 0
      %400 = vmatmul.mubr.bf16.gmra.mxu0 %v275
      %v401 = vpop.f32.mrf.mxu0
      %v402 = vadd.f32 %v238, %v401
      %v403 = vpop.f32.mrf.mxu0
      %v404 = vpop.f32.mrf.mxu0
      %v405 = vadd.f32 %v238, %v404
      %v406 = vpop.f32.mrf.mxu0
      %407 = vmatprep.mubr.bf16.mxu0 0
      %408 = vmatmul.mubr.bf16.gmra.mxu0 %v276
      %v409 = vpop.f32.mrf.mxu0
      %v410 = vadd.f32 %v238, %v409
      %v411 = vpop.f32.mrf.mxu0
      %v412 = vpop.f32.mrf.mxu0
      %v413 = vadd.f32 %v238, %v412
      %v414 = vpop.f32.mrf.mxu0
      %415 = vmatprep.mubr.bf16.mxu0 0
      %416 = vmatmul.mubr.bf16.gmra.mxu0 %v277
      %v417 = vpop.f32.mrf.mxu0
      %v418 = vadd.f32 %v238, %v417
      %v419 = vpop.f32.mrf.mxu0
      %v420 = vpop.f32.mrf.mxu0
      %v421 = vadd.f32 %v238, %v420
      %v422 = vpop.f32.mrf.mxu0
      %423 = vmatprep.mubr.bf16.mxu0 0
      %424 = vmatmul.mubr.bf16.gmra.mxu0 %v278
      %v425 = vpop.f32.mrf.mxu0
      %v426 = vadd.f32 %v238, %v425
      %v427 = vpop.f32.mrf.mxu0
      %v428 = vpop.f32.mrf.mxu0
      %v429 = vadd.f32 %v238, %v428
      %v430 = vpop.f32.mrf.mxu0
      %431 = vdwg.mxu0
      %v432 = vmax.f32 %v370, 0.0
      %v433 = vmax.f32 %v373, 0.0
      %v434 = vmax.f32 %v378, 0.0
      %v435 = vmax.f32 %v381, 0.0
      %v436 = vmax.f32 %v386, 0.0
      %v437 = vmax.f32 %v389, 0.0
      %v438 = vmax.f32 %v394, 0.0
      %v439 = vmax.f32 %v397, 0.0
      %v440 = vmax.f32 %v402, 0.0
      %v441 = vmax.f32 %v405, 0.0
      %v442 = vmax.f32 %v410, 0.0
      %v443 = vmax.f32 %v413, 0.0
      %v444 = vmax.f32 %v418, 0.0
      %v445 = vmax.f32 %v421, 0.0
      %v446 = vmax.f32 %v426, 0.0
      %v447 = vmax.f32 %v429, 0.0
      %v448 = vpack.c.bf16 %v433, %v432
      %v449 = vpack.c.bf16 %v435, %v434
      %v450 = vpack.c.bf16 %v437, %v436
      %v451 = vpack.c.bf16 %v439, %v438
      %v452 = vpack.c.bf16 %v441, %v440
      %v453 = vpack.c.bf16 %v443, %v442
      %v454 = vpack.c.bf16 %v445, %v444
      %v455 = vpack.c.bf16 %v447, %v446
      %v456 = vld [vmem:[%s2] sm:$0xf]
      %v457 = vld [vmem:[%s2 + $0x4] sm:$0xf]
      %v458 = vld [vmem:[%s2 + $0x8] sm:$0xf]
      %v459 = vld [vmem:[%s2 + $0xc] sm:$0xf]
      %v460 = vld [vmem:[%s2 + $0x10] sm:$0xf]
      %v461 = vld [vmem:[%s2 + $0x14] sm:$0xf]
      %v462 = vld [vmem:[%s2 + $0x18] sm:$0xf]
      %v463 = vld [vmem:[%s2 + $0x1c] sm:$0xf]
      %v464 = vld [vmem:[%s2 + $0x20] sm:$0xf]
      %v465 = vld [vmem:[%s2 + $0x24] sm:$0xf]
      %v466 = vld [vmem:[%s2 + $0x28] sm:$0xf]
      %v467 = vld [vmem:[%s2 + $0x2c] sm:$0xf]
      %v468 = vld [vmem:[%s2 + $0x30] sm:$0xf]
      %v469 = vld [vmem:[%s2 + $0x34] sm:$0xf]
      %v470 = vld [vmem:[%s2 + $0x38] sm:$0xf]
      %v471 = vld [vmem:[%s2 + $0x3c] sm:$0xf]
      %v472 = vlaneseq
      %v473 = vshrl.u32 %v472, 7
      %v474 = vsub.s32 1, %v473
      %v475 = vrot.slane %v234, %v474
      %v492 = vunpack.c.l.b16 %v456
      %v493 = vunpack.c.l.b16 %v457
      %v494 = vunpack.c.l.b16 %v458
      %v495 = vunpack.c.l.b16 %v459
      %v496 = vunpack.c.l.b16 %v460
      %v497 = vunpack.c.l.b16 %v461
      %v498 = vunpack.c.l.b16 %v462
      %v499 = vunpack.c.l.b16 %v463
      %v500 = vunpack.c.l.b16 %v464
      %v501 = vunpack.c.l.b16 %v465
      %v502 = vunpack.c.l.b16 %v466
      %v503 = vunpack.c.l.b16 %v467
      %v504 = vunpack.c.l.b16 %v468
      %v505 = vunpack.c.l.b16 %v469
      %v506 = vunpack.c.l.b16 %v470
      %v507 = vunpack.c.l.b16 %v471
      %v508 = vpack.c.b16 %v493, %v492
      %v509 = vpack.c.b16 %v495, %v494
      %v510 = vpack.c.b16 %v497, %v496
      %v511 = vpack.c.b16 %v499, %v498
      %v512 = vpack.c.b16 %v501, %v500
      %v513 = vpack.c.b16 %v503, %v502
      %v514 = vpack.c.b16 %v505, %v504
      %v515 = vpack.c.b16 %v507, %v506
      %524 = vmatprep.subr.bf16.mxu0 0
      %525 = vmatpush1.bf16.msra.mxu0 %v515
      %526 = vmatprep.subr.bf16.mxu0 0
      %527 = vmatpush1.bf16.msra.mxu0 %v514
      %528 = vmatprep.subr.bf16.mxu0 0
      %529 = vmatpush1.bf16.msra.mxu0 %v513
      %530 = vmatprep.subr.bf16.mxu0 0
      %531 = vmatpush1.bf16.msra.mxu0 %v512
      %532 = vmatprep.subr.bf16.mxu0 0
      %533 = vmatpush1.bf16.msra.mxu0 %v511
      %534 = vmatprep.subr.bf16.mxu0 0
      %535 = vmatpush1.bf16.msra.mxu0 %v510
      %536 = vmatprep.subr.bf16.mxu0 0
      %537 = vmatpush1.bf16.msra.mxu0 %v509
      %538 = vmatprep.subr.bf16.mxu0 0
      %539 = vmatpush1.bf16.msra.mxu0 %v508
      %540 = vmatprep.subr.bf16.mxu0 0
      %541 = vmatpush2.bf16.msra.mxu0 0
      %542 = vmatprep.subr.bf16.mxu0 0
      %543 = vmatpush2.bf16.msra.mxu0 0
      %544 = vmatprep.subr.bf16.mxu0 0
      %545 = vmatpush2.bf16.msra.mxu0 0
      %546 = vmatprep.subr.bf16.mxu0 0
      %547 = vmatpush2.bf16.msra.mxu0 0
      %548 = vmatprep.subr.bf16.mxu0 0
      %549 = vmatpush2.bf16.msra.mxu0 0
      %550 = vmatprep.subr.bf16.mxu0 0
      %551 = vmatpush2.bf16.msra.mxu0 0
      %552 = vmatprep.subr.bf16.mxu0 0
      %553 = vmatpush2.bf16.msra.mxu0 0
      %554 = vmatprep.subr.bf16.mxu0 0
      %555 = vmatpush2.bf16.msra.mxu0 0
      %556 = vmatprep.mubr.bf16.mxu0 0
      %557 = vmatmul.mubr.bf16.gmra.mxu0 %v448
      %v558 = vpop.f32.mrf.mxu0
      %v559 = vadd.f32 %v475, %v558
      %v560 = vpop.f32.mrf.mxu0
      %v561 = vpop.f32.mrf.mxu0
      %v562 = vadd.f32 %v475, %v561
      %v563 = vpop.f32.mrf.mxu0
      %564 = vmatprep.mubr.bf16.mxu0 0
      %565 = vmatmul.mubr.bf16.gmra.mxu0 %v449
      %v566 = vpop.f32.mrf.mxu0
      %v567 = vadd.f32 %v475, %v566
      %v568 = vpop.f32.mrf.mxu0
      %v569 = vpop.f32.mrf.mxu0
      %v570 = vadd.f32 %v475, %v569
      %v571 = vpop.f32.mrf.mxu0
      %572 = vmatprep.mubr.bf16.mxu0 0
      %573 = vmatmul.mubr.bf16.gmra.mxu0 %v450
      %v574 = vpop.f32.mrf.mxu0
      %v575 = vadd.f32 %v475, %v574
      %v576 = vpop.f32.mrf.mxu0
      %v577 = vpop.f32.mrf.mxu0
      %v578 = vadd.f32 %v475, %v577
      %v579 = vpop.f32.mrf.mxu0
      %580 = vmatprep.mubr.bf16.mxu0 0
      %581 = vmatmul.mubr.bf16.gmra.mxu0 %v451
      %v582 = vpop.f32.mrf.mxu0
      %v583 = vadd.f32 %v475, %v582
      %v584 = vpop.f32.mrf.mxu0
      %v585 = vpop.f32.mrf.mxu0
      %v586 = vadd.f32 %v475, %v585
      %v587 = vpop.f32.mrf.mxu0
      %588 = vmatprep.mubr.bf16.mxu0 0
      %589 = vmatmul.mubr.bf16.gmra.mxu0 %v452
      %v590 = vpop.f32.mrf.mxu0
      %v591 = vadd.f32 %v475, %v590
      %v592 = vpop.f32.mrf.mxu0
      %v593 = vpop.f32.mrf.mxu0
      %v594 = vadd.f32 %v475, %v593
      %v595 = vpop.f32.mrf.mxu0
      %596 = vmatprep.mubr.bf16.mxu0 0
      %597 = vmatmul.mubr.bf16.gmra.mxu0 %v453
      %v598 = vpop.f32.mrf.mxu0
      %v599 = vadd.f32 %v475, %v598
      %v600 = vpop.f32.mrf.mxu0
      %v601 = vpop.f32.mrf.mxu0
      %v602 = vadd.f32 %v475, %v601
      %v603 = vpop.f32.mrf.mxu0
      %604 = vmatprep.mubr.bf16.mxu0 0
      %605 = vmatmul.mubr.bf16.gmra.mxu0 %v454
      %v606 = vpop.f32.mrf.mxu0
      %v607 = vadd.f32 %v475, %v606
      %v608 = vpop.f32.mrf.mxu0
      %v609 = vpop.f32.mrf.mxu0
      %v610 = vadd.f32 %v475, %v609
      %v611 = vpop.f32.mrf.mxu0
      %612 = vmatprep.mubr.bf16.mxu0 0
      %613 = vmatmul.mubr.bf16.gmra.mxu0 %v455
      %v614 = vpop.f32.mrf.mxu0
      %v615 = vadd.f32 %v475, %v614
      %v616 = vpop.f32.mrf.mxu0
      %v617 = vpop.f32.mrf.mxu0
      %v618 = vadd.f32 %v475, %v617
      %v619 = vpop.f32.mrf.mxu0
      %620 = vdwg.mxu0
      %621 = vst [vmem:[%s199] sm:$0xff] %v559
      %622 = vst [vmem:[%s199 + $0x8] sm:$0xff] %v562
      %623 = vst [vmem:[%s199 + $0x10] sm:$0xff] %v567
      %624 = vst [vmem:[%s199 + $0x18] sm:$0xff] %v570
      %625 = vst [vmem:[%s199 + $0x20] sm:$0xff] %v575
      %626 = vst [vmem:[%s199 + $0x28] sm:$0xff] %v578
      %627 = vst [vmem:[%s199 + $0x30] sm:$0xff] %v583
      %628 = vst [vmem:[%s199 + $0x38] sm:$0xff] %v586
      %629 = vst [vmem:[%s199 + $0x40] sm:$0xff] %v591
      %630 = vst [vmem:[%s199 + $0x48] sm:$0xff] %v594
      %631 = vst [vmem:[%s199 + $0x50] sm:$0xff] %v599
      %632 = vst [vmem:[%s199 + $0x58] sm:$0xff] %v602
      %633 = vst [vmem:[%s199 + $0x60] sm:$0xff] %v607
      %634 = vst [vmem:[%s199 + $0x68] sm:$0xff] %v610
      %635 = vst [vmem:[%s199 + $0x70] sm:$0xff] %v615
      %636 = vst [vmem:[%s199 + $0x78] sm:$0xff] %v618
      %s637 = smul.u32 16, %s15
      %p638 = scmp.lt.s32.totalorder %s637, 31
      %s639 = scalar_select %p638, %s637, 31
      %s640 = smul.addr %s639, 8
      %s641 = scalar_lea.vmem %s4, %s640
      // Predicated region
      $region37: #{decoder_forward.1} parent=35 // pred_check
        %p642 = pneg %p122
      $region38: #{decoder_forward.1} parent=35 // pred_check_branch
        %644 = sbr.rel (%p642) target = $region40
      $region39: #{decoder_forward.1} parent=35 // pred_region
        %s645 = smul.u32 16, %s15
      $region40: #{decoder_forward.1} parent=35 // pred_fallthru
        _
    $region36: #{decoder_forward.1} parent=5 // pred_fallthru
      _
    %p646 = scmp.le.s32.totalorder 2, %s10
    // Predicated region
    $region41: #{decoder_forward.1} parent=5 // pred_check
      %p647 = pneg %p646
    $region42: #{decoder_forward.1} parent=5 // pred_check_branch
      %649 = sbr.rel (%p647) target = $region44
    $region43: #{decoder_forward.1} parent=5 // pred_region
      %s650 = ssub.s32 %s10, 2
      // Predicated region
      $region45: #{decoder_forward.1} parent=43 // pred_check
        %p651 = pneg %p128
      $region46: #{decoder_forward.1} parent=43 // pred_check_branch
        %653 = sbr.rel (%p651) target = $region48
      $region47: #{decoder_forward.1} parent=43 // pred_region
        %s654 = smul.u32 16, %s16
        %p655 = scmp.lt.s32.totalorder %s654, 31
        %s656 = scalar_select %p655, %s654, 31
        %s657 = smul.addr %s656, 8
        %s658 = scalar_lea.vmem %s4, %s657
      $region48: #{decoder_forward.1} parent=43 // pred_fallthru
        _
    $region44: #{decoder_forward.1} parent=5 // pred_fallthru
      _
  $region6: #{decoder_forward.1} parent=0 // loop_footer
    %s14 = sadd.s32 1, %s10
  $region7: #{decoder_forward.1} parent=0 // loop_footer_branch
    %9 = sbr.rel target = $region3
  $region8: #{decoder_forward.1} parent=0 // loop_exit
    _

</llo_original>
